<compile_context>
chip_gen: v6e
topology: v6e:2x2x1
jax: 0.10.0
libtpu: 0.0.40
codegen_flags: <defaults>
</compile_context>

<pallas_src>
import functools

import jax
import jax.numpy as jnp
from jax import lax
from jax.experimental import pallas as pl
from jax.experimental.pallas import tpu as pltpu

EPS = 1e-5


def _round_up(v, m):
    return (v + m - 1) // m * m


def basic_block_kernel(x_ref, wbig_ref, sbig_ref, bbig_ref,
                       w2_ref, s2_ref, b2_ref,
                       wf1_ref, bf1_ref, wf2_ref, bf2_ref,
                       ssum_ref, sbc_ref, hmask_ref,
                       out_ref,
                       xim_ref, him_ref, hmw_ref,
                       *, K, pad, cout, cin_p, nc):
    # ---- conv1 (+ fused 1x1 downsample rows), BN scale/shift applied post-matmul in f32 ----
    # tap k of output column c is x_wide[:, c + k]; x_wide is per-element pre-padded in the
    # wrapper (plus a 2*pad halo at the end), so every tap is a static lane slice.
    for k in range(K):
        xim_ref[k * cin_p:(k + 1) * cin_p, :] = x_ref[0, :, k:k + nc]
    y1 = jnp.dot(wbig_ref[...], xim_ref[...], preferred_element_type=jnp.float32)
    y1 = sbig_ref[...] * y1 + bbig_ref[...]            # (2*Cout, Nc) f32
    h = jnp.maximum(y1[:cout], 0.0)                     # relu(bn1(conv1(x)))   (Cout, Nc)
    idn = y1[cout:]                                     # bnd(conv1x1(x))       (Cout, Nc)

    # ---- conv2: re-pad h per element, im2col via static slices of a wide VMEM scratch ----
    hm = (h * hmask_ref[...]).astype(hmw_ref.dtype)     # zero the inter-element dead columns
    if pad > 0:
        hmw_ref[:, :pad] = jnp.zeros((cout, pad), hmw_ref.dtype)
        hmw_ref[:, pad + nc:] = jnp.zeros((cout, pad), hmw_ref.dtype)
    hmw_ref[:, pad:pad + nc] = hm
    for k in range(K):
        him_ref[k * cout:(k + 1) * cout, :] = hmw_ref[:, k:k + nc]
    y2 = jnp.dot(w2_ref[...], him_ref[...], preferred_element_type=jnp.float32)
    y2 = s2_ref[...] * y2 + b2_ref[...]                 # (Cout, Nc) f32

    # ---- SE block: per-element mean (segmented selector matmul) -> fc1 -> relu -> fc2 -> sigmoid ----
    m = jnp.dot(y2, ssum_ref[...], preferred_element_type=jnp.float32)          # (Cout, Bt)
    z = jnp.maximum(
        jnp.dot(wf1_ref[...], m, preferred_element_type=jnp.float32) + bf1_ref[...], 0.0)
    g = jax.nn.sigmoid(
        jnp.dot(wf2_ref[...], z, preferred_element_type=jnp.float32) + bf2_ref[...])
    gate = jnp.dot(g, sbc_ref[...], preferred_element_type=jnp.float32)         # (Cout, Nc)

    # ---- SE scaling + residual + final relu; one lane-dense store ----
    out_ref[0] = jnp.maximum(y2 * gate + idn, 0.0).astype(out_ref.dtype)


def _pick_batch_tile(B, Lp, target_cols=512):
    """Largest divisor of B such that Bt*Lp stays near ~target_cols lanes."""
    cap = max(1, target_cols // Lp)
    bt = 1
    for cand in range(1, min(B, cap) + 1):
        if B % cand == 0:
            bt = cand
    return bt


@functools.partial(jax.jit, static_argnames=("kernel_size", "stride"))
def basic_block_1d(x_ncl, p, kernel_size=3, stride=1):
    """x_ncl: (B, C_in, L) float32 (PyTorch NCL layout). Returns (B, C_out, L)."""
    assert stride == 1, "stride != 1 not used by this instantiation"
    K = kernel_size
    pad = K // 2
    B, Cin, L = x_ncl.shape
    Cout = p["conv1_w"].shape[0]
    Chid = p["fc1_w"].shape[0]
    assert Cout % 8 == 0, "Cout must be a multiple of 8 (sublane alignment)"

    Cin_p = _round_up(Cin, 8)                 # pad input channels -> aligned im2col row blocks
    Chid_p = _round_up(max(Chid, 1), 8)       # pad SE hidden dim  -> aligned tiny matmuls
    Lp = L + 2 * pad                          # per-element padded length
    Bt = _pick_batch_tile(B, Lp)              # batch elements packed per grid step
    G = B // Bt                               # grid steps (v7x: ideally an even multiple of 2 TCs)
    Nc = Bt * Lp                              # lane width of one step's working slab
    Ncw = Nc + 2 * pad                        # + halo so conv taps are static slices

    # ---- pack the input: per-element zero pad, group Bt elements on the lane axis ----
    xq = jnp.pad(x_ncl, ((0, 0), (0, Cin_p - Cin), (pad, pad)))            # (B, Cin_p, Lp)
    xq = xq.reshape(G, Bt, Cin_p, Lp).transpose(0, 2, 1, 3).reshape(G, Cin_p, Nc)
    xw = jnp.pad(xq, ((0, 0), (0, 0), (0, 2 * pad))).astype(jnp.bfloat16)  # (G, Cin_p, Ncw)

    # ---- BatchNorm (eval mode): fold bias, keep scale as an f32 per-row post-matmul multiply ----
    def bn_fold(conv_b, gamma, beta, mean, var):
        s = gamma * lax.rsqrt(var + EPS)
        return s, (conv_b - mean) * s + beta

    s1, b1 = bn_fold(p["conv1_b"], p["bn1_g"], p["bn1_b"], p["bn1_m"], p["bn1_v"])
    s2, b2 = bn_fold(p["conv2_b"], p["bn2_g"], p["bn2_b"], p["bn2_m"], p["bn2_v"])
    sd, bd = bn_fold(p["down_b"], p["bnd_g"], p["bnd_b"], p["bnd_m"], p["bnd_v"])

    # conv1 matrix (Cout, K*Cin_p), column index = k*Cin_p + ci; downsample fused as extra rows.
    w1p = jnp.pad(p["conv1_w"], ((0, 0), (0, Cin_p - Cin), (0, 0)))        # (Cout, Cin_p, K)
    w1_mat = jnp.transpose(w1p, (0, 2, 1)).reshape(Cout, K * Cin_p)
    wbig = jnp.zeros((2 * Cout, K * Cin_p), jnp.float32)
    wbig = wbig.at[:Cout].set(w1_mat)
    wbig = wbig.at[Cout:, pad * Cin_p:pad * Cin_p + Cin].set(p["down_w"][:, :, 0])
    wbig = wbig.astype(jnp.bfloat16)
    sbig = jnp.concatenate([s1, sd]).reshape(2 * Cout, 1).astype(jnp.float32)
    bbig = jnp.concatenate([b1, bd]).reshape(2 * Cout, 1).astype(jnp.float32)

    w2_mat = jnp.transpose(p["conv2_w"], (0, 2, 1)).reshape(Cout, K * Cout).astype(jnp.bfloat16)
    s2c = s2.reshape(Cout, 1).astype(jnp.float32)
    b2c = b2.reshape(Cout, 1).astype(jnp.float32)

    wf1 = jnp.pad(p["fc1_w"], ((0, Chid_p - Chid), (0, 0))).astype(jnp.float32)   # (Chid_p, Cout)
    bf1 = jnp.pad(p["fc1_b"], ((0, Chid_p - Chid),)).reshape(Chid_p, 1).astype(jnp.float32)
    wf2 = jnp.pad(p["fc2_w"], ((0, 0), (0, Chid_p - Chid))).astype(jnp.float32)   # (Cout, Chid_p)
    bf2 = p["fc2_b"].reshape(Cout, 1).astype(jnp.float32)

    # ---- constant selectors for the segmented (per-element) SE reduction / broadcast ----
    col = jnp.arange(Nc)
    elem = col // Lp
    pos = col % Lp
    valid = pos < L
    ssum = jnp.where(valid[:, None] & (elem[:, None] == jnp.arange(Bt)[None, :]),
                     1.0 / L, 0.0).astype(jnp.float32)                             # (Nc, Bt)
    sbc = (elem[None, :] == jnp.arange(Bt)[:, None]).astype(jnp.float32)            # (Bt, Nc)
    hmask = valid.astype(jnp.float32).reshape(1, Nc)                                # (1, Nc)

    # ---- VMEM budget derived from the chosen block sizes (clamped to v7x's 64 MiB) ----
    def tile_bytes(shape, itemsize):
        lead = 1
        for d in shape[:-2]:
            lead *= d
        return lead * _round_up(shape[-2], 8) * _round_up(shape[-1], 128) * itemsize

    est = 2 * tile_bytes((Cin_p, Ncw), 2) + 2 * tile_bytes((Cout, Nc), 4)
    for shp, isz in [((2 * Cout, K * Cin_p), 2), ((2 * Cout, 1), 4), ((2 * Cout, 1), 4),
                     ((Cout, K * Cout), 2), ((Cout, 1), 4), ((Cout, 1), 4),
                     ((Chid_p, Cout), 4), ((Chid_p, 1), 4), ((Cout, Chid_p), 4), ((Cout, 1), 4),
                     ((Nc, Bt), 4), ((Bt, Nc), 4), ((1, Nc), 4)]:
        est += 2 * tile_bytes(shp, isz)
    est += tile_bytes((K * Cin_p, Nc), 2) + tile_bytes((K * Cout, Nc), 2) + tile_bytes((Cout, Ncw), 2)
    est += 6 * tile_bytes((Cout, Nc), 4)          # in-register intermediates (y1, y2, gate, ...)
    vmem_limit = int(min(64 * 1024 * 1024, max(32 * 1024 * 1024, 2 * est)))

    def const_spec(shape):
        return pl.BlockSpec(shape, lambda *_: (0,) * len(shape))   # same block every grid step

    out_packed = pl.pallas_call(
        functools.partial(basic_block_kernel, K=K, pad=pad, cout=Cout, cin_p=Cin_p, nc=Nc),
        out_shape=jax.ShapeDtypeStruct((G, Cout, Nc), jnp.float32),
        grid=(G,),
        in_specs=[
            pl.BlockSpec((1, Cin_p, Ncw), lambda g: (g, 0, 0)),     # packed input slab / step
            const_spec((2 * Cout, K * Cin_p)),                      # fused conv1 + downsample weights
            const_spec((2 * Cout, 1)),                              # BN scales (f32, post-matmul)
            const_spec((2 * Cout, 1)),                              # folded biases
            const_spec((Cout, K * Cout)),                           # conv2 weights
            const_spec((Cout, 1)),                                  # conv2 BN scale
            const_spec((Cout, 1)),                                  # conv2 folded bias
            const_spec((Chid_p, Cout)),                             # SE fc1 weight
            const_spec((Chid_p, 1)),                                # SE fc1 bias
            const_spec((Cout, Chid_p)),                             # SE fc2 weight
            const_spec((Cout, 1)),                                  # SE fc2 bias
            const_spec((Nc, Bt)),                                   # segmented-mean selector
            const_spec((Bt, Nc)),                                   # gate broadcast selector
            const_spec((1, Nc)),                                    # valid-column mask for conv2 input
        ],
        out_specs=pl.BlockSpec((1, Cout, Nc), lambda g: (g, 0, 0)),
        scratch_shapes=[
            pltpu.VMEM((K * Cin_p, Nc), jnp.bfloat16),              # conv1 im2col rows
            pltpu.VMEM((K * Cout, Nc), jnp.bfloat16),               # conv2 im2col rows
            pltpu.VMEM((Cout, Ncw), jnp.bfloat16),                  # re-padded conv2 input (halo)
        ],
        compiler_params=pltpu.CompilerParams(
            dimension_semantics=("parallel",),                      # batch-block axis across TCs
            vmem_limit_bytes=vmem_limit,
        ),
    )(xw, wbig, sbig, bbig, w2_mat, s2c, b2c, wf1, bf1, wf2, bf2, ssum, sbc, hmask)

    # unpack the lane-dense slab back to PyTorch (B, Cout, L) layout (pure layout plumbing).
    out = out_packed.reshape(G, Cout, Bt, Lp)[:, :, :, :L]
    out = jnp.transpose(out, (0, 2, 1, 3)).reshape(B, Cout, L)
    return out.astype(x_ncl.dtype)   # TODO(synk): emit bf16 here if downstream accepts it.


# ----------------------------- deterministic params -----------------------------
def init_params(key, in_ch, out_ch, kernel_size=3, reduction=16):
    hid = out_ch // reduction
    ks = jax.random.split(key, 10)
    s = 0.1
    return dict(
        conv1_w=s * jax.random.normal(ks[0], (out_ch, in_ch, kernel_size), jnp.float32),
        conv1_b=s * jax.random.normal(ks[1], (out_ch,), jnp.float32),
        bn1_g=jnp.ones((out_ch,), jnp.float32), bn1_b=jnp.zeros((out_ch,), jnp.float32),
        bn1_m=jnp.zeros((out_ch,), jnp.float32), bn1_v=jnp.ones((out_ch,), jnp.float32),
        conv2_w=s * jax.random.normal(ks[2], (out_ch, out_ch, kernel_size), jnp.float32),
        conv2_b=s * jax.random.normal(ks[3], (out_ch,), jnp.float32),
        bn2_g=jnp.ones((out_ch,), jnp.float32), bn2_b=jnp.zeros((out_ch,), jnp.float32),
        bn2_m=jnp.zeros((out_ch,), jnp.float32), bn2_v=jnp.ones((out_ch,), jnp.float32),
        fc1_w=s * jax.random.normal(ks[4], (hid, out_ch), jnp.float32),
        fc1_b=s * jax.random.normal(ks[5], (hid,), jnp.float32),
        fc2_w=s * jax.random.normal(ks[6], (out_ch, hid), jnp.float32),
        fc2_b=s * jax.random.normal(ks[7], (out_ch,), jnp.float32),
        down_w=s * jax.random.normal(ks[8], (out_ch, in_ch, 1), jnp.float32),
        down_b=s * jax.random.normal(ks[9], (out_ch,), jnp.float32),
        bnd_g=jnp.ones((out_ch,), jnp.float32), bnd_b=jnp.zeros((out_ch,), jnp.float32),
        bnd_m=jnp.zeros((out_ch,), jnp.float32), bnd_v=jnp.ones((out_ch,), jnp.float32),
    )


# ----------------------------- pure-JAX reference --------------------------------
def reference_forward(x, p, kernel_size=3):
    pad = kernel_size // 2

    def conv1d(x, w, b, pad):
        y = lax.conv_general_dilated(x, w, (1,), [(pad, pad)],
                                     dimension_numbers=("NCH", "OIH", "NCH"))
        return y + b[None, :, None]

    def bn(x, g, b, m, v):
        return (x - m[None, :, None]) * (g / jnp.sqrt(v + EPS))[None, :, None] + b[None, :, None]

    out = jax.nn.relu(bn(conv1d(x, p["conv1_w"], p["conv1_b"], pad),
                         p["bn1_g"], p["bn1_b"], p["bn1_m"], p["bn1_v"]))
    out = bn(conv1d(out, p["conv2_w"], p["conv2_b"], pad),
             p["bn2_g"], p["bn2_b"], p["bn2_m"], p["bn2_v"])
    # SE
    y = out.mean(axis=-1)
    y = jax.nn.relu(y @ p["fc1_w"].T + p["fc1_b"])
    y = jax.nn.sigmoid(y @ p["fc2_w"].T + p["fc2_b"])
    out = out * y[:, :, None]
    # downsample identity
    idn = bn(conv1d(x, p["down_w"], p["down_b"], 0),
             p["bnd_g"], p["bnd_b"], p["bnd_m"], p["bnd_v"])
    return jax.nn.relu(out + idn)


if __name__ == "__main__":
    B, Cin, Cout, L = 2, 4, 32, 16   # Cout=32 so SE hidden = 32//16 = 2
    key = jax.random.PRNGKey(0)
    kx, kp = jax.random.split(key)
    x = jax.random.normal(kx, (B, Cin, L), jnp.float32)
    params = init_params(kp, Cin, Cout)

    out = jax.block_until_ready(basic_block_1d(x, params))
    ref = jax.block_until_ready(reference_forward(x, params))

    assert out.shape == (B, Cout, L), out.shape
    # bf16 matmul operands (f32 accumulation, f32 BN scaling) vs pure-f32 reference.
    max_err = float(jnp.max(jnp.abs(out - ref)))
    assert max_err < 2e-2, f"max abs err {max_err}"
    print("KERNEL_OK")
</pallas_src>

<mosaic_0001>
module attributes {stable_mosaic.version = 11 : i64} {
  func.func @basic_block_kernel(%arg0: i32, %arg1: memref<1x8x38xbf16, #tpu.memory_space<vmem>>, %arg2: memref<64x24xbf16, #tpu.memory_space<vmem>>, %arg3: memref<64x1xf32, #tpu.memory_space<vmem>>, %arg4: memref<64x1xf32, #tpu.memory_space<vmem>>, %arg5: memref<32x96xbf16, #tpu.memory_space<vmem>>, %arg6: memref<32x1xf32, #tpu.memory_space<vmem>>, %arg7: memref<32x1xf32, #tpu.memory_space<vmem>>, %arg8: memref<8x32xf32, #tpu.memory_space<vmem>>, %arg9: memref<8x1xf32, #tpu.memory_space<vmem>>, %arg10: memref<32x8xf32, #tpu.memory_space<vmem>>, %arg11: memref<32x1xf32, #tpu.memory_space<vmem>>, %arg12: memref<36x2xf32, #tpu.memory_space<vmem>>, %arg13: memref<2x36xf32, #tpu.memory_space<vmem>>, %arg14: memref<1x36xf32, #tpu.memory_space<vmem>>, %arg15: memref<1x32x36xf32, #tpu.memory_space<vmem>>, %arg16: memref<24x36xbf16, #tpu.memory_space<vmem>>, %arg17: memref<96x36xbf16, #tpu.memory_space<vmem>>, %arg18: memref<32x38xbf16, #tpu.memory_space<vmem>>) attributes {dimension_semantics = [#tpu.dimension_semantics<parallel>], iteration_bounds = array<i64: 1>, scalar_prefetch = 0 : i64, scratch_operands = 3 : i64, tpu.core_type = #tpu.core_type<tc>, window_params = [{transform_indices = @transform_0, window_bounds = array<i64: 1, 8, 38>}, {pipeline_mode = #tpu.pipeline_mode<synchronous>, transform_indices = @transform_1, window_bounds = array<i64: 64, 24>}, {pipeline_mode = #tpu.pipeline_mode<synchronous>, transform_indices = @transform_2, window_bounds = array<i64: 64, 1>}, {pipeline_mode = #tpu.pipeline_mode<synchronous>, transform_indices = @transform_3, window_bounds = array<i64: 64, 1>}, {pipeline_mode = #tpu.pipeline_mode<synchronous>, transform_indices = @transform_4, window_bounds = array<i64: 32, 96>}, {pipeline_mode = #tpu.pipeline_mode<synchronous>, transform_indices = @transform_5, window_bounds = array<i64: 32, 1>}, {pipeline_mode = #tpu.pipeline_mode<synchronous>, transform_indices = @transform_6, window_bounds = array<i64: 32, 1>}, {pipeline_mode = #tpu.pipeline_mode<synchronous>, transform_indices = @transform_7, window_bounds = array<i64: 8, 32>}, {pipeline_mode = #tpu.pipeline_mode<synchronous>, transform_indices = @transform_8, window_bounds = array<i64: 8, 1>}, {pipeline_mode = #tpu.pipeline_mode<synchronous>, transform_indices = @transform_9, window_bounds = array<i64: 32, 8>}, {pipeline_mode = #tpu.pipeline_mode<synchronous>, transform_indices = @transform_10, window_bounds = array<i64: 32, 1>}, {pipeline_mode = #tpu.pipeline_mode<synchronous>, transform_indices = @transform_11, window_bounds = array<i64: 36, 2>}, {pipeline_mode = #tpu.pipeline_mode<synchronous>, transform_indices = @transform_12, window_bounds = array<i64: 2, 36>}, {pipeline_mode = #tpu.pipeline_mode<synchronous>, transform_indices = @transform_13, window_bounds = array<i64: 1, 36>}, {transform_indices = @transform_14, window_bounds = array<i64: 1, 32, 36>}]} {
    %c0 = arith.constant 0 : index
    %c0_0 = arith.constant 0 : index
    %c0_1 = arith.constant 0 : index
    %0 = vector.load %arg1[%c0, %c0_0, %c0_1] : memref<1x8x38xbf16, #tpu.memory_space<vmem>>, vector<1x8x36xbf16>
    %1 = vector.shape_cast %0 : vector<1x8x36xbf16> to vector<8x36xbf16>
    %c0_2 = arith.constant 0 : index
    %c0_3 = arith.constant 0 : index
    %2 = vector.load %arg16[%c0_2, %c0_3] : memref<24x36xbf16, #tpu.memory_space<vmem>>, vector<8x36xbf16>
    tpu.vector_store %arg16[%c0_2, %c0_3], %1 {strides = array<i32>} : memref<24x36xbf16, #tpu.memory_space<vmem>>, vector<8x36xbf16>,
    %c0_4 = arith.constant 0 : index
    %c0_5 = arith.constant 0 : index
    %c1 = arith.constant 1 : index
    %3 = vector.load %arg1[%c0_4, %c0_5, %c1] : memref<1x8x38xbf16, #tpu.memory_space<vmem>>, vector<1x8x36xbf16>
    %4 = vector.shape_cast %3 : vector<1x8x36xbf16> to vector<8x36xbf16>
    %c8 = arith.constant 8 : index
    %c0_6 = arith.constant 0 : index
    %5 = vector.load %arg16[%c8, %c0_6] : memref<24x36xbf16, #tpu.memory_space<vmem>>, vector<8x36xbf16>
    tpu.vector_store %arg16[%c8, %c0_6], %4 {strides = array<i32>} : memref<24x36xbf16, #tpu.memory_space<vmem>>, vector<8x36xbf16>,
    %c0_7 = arith.constant 0 : index
    %c0_8 = arith.constant 0 : index
    %c2 = arith.constant 2 : index
    %6 = vector.load %arg1[%c0_7, %c0_8, %c2] : memref<1x8x38xbf16, #tpu.memory_space<vmem>>, vector<1x8x36xbf16>
    %7 = vector.shape_cast %6 : vector<1x8x36xbf16> to vector<8x36xbf16>
    %c16 = arith.constant 16 : index
    %c0_9 = arith.constant 0 : index
    %8 = vector.load %arg16[%c16, %c0_9] : memref<24x36xbf16, #tpu.memory_space<vmem>>, vector<8x36xbf16>
    tpu.vector_store %arg16[%c16, %c0_9], %7 {strides = array<i32>} : memref<24x36xbf16, #tpu.memory_space<vmem>>, vector<8x36xbf16>,
    %c0_10 = arith.constant 0 : index
    %c0_11 = arith.constant 0 : index
    %9 = vector.load %arg2[%c0_10, %c0_11] : memref<64x24xbf16, #tpu.memory_space<vmem>>, vector<64x24xbf16>
    %c0_12 = arith.constant 0 : index
    %c0_13 = arith.constant 0 : index
    %10 = vector.load %arg16[%c0_12, %c0_13] : memref<24x36xbf16, #tpu.memory_space<vmem>>, vector<24x36xbf16>
    %cst = arith.constant dense<0.000000e+00> : vector<64x36xf32>
    %11 = tpu.matmul %9, %10, %cst {dimension_numbers = #tpu.dot_dimension_numbers<[1], [0], [0], [1], [0, 0, 1, 1], [], []>} : vector<64x24xbf16>, vector<24x36xbf16>, vector<64x36xf32> -> vector<64x36xf32>
    %c0_14 = arith.constant 0 : index
    %c0_15 = arith.constant 0 : index
    %12 = vector.load %arg3[%c0_14, %c0_15] : memref<64x1xf32, #tpu.memory_space<vmem>>, vector<64x1xf32>
    %13 = vector.broadcast %12 : vector<64x1xf32> to vector<64x36xf32>
    %14 = arith.mulf %13, %11 : vector<64x36xf32>
    %c0_16 = arith.constant 0 : index
    %c0_17 = arith.constant 0 : index
    %15 = vector.load %arg4[%c0_16, %c0_17] : memref<64x1xf32, #tpu.memory_space<vmem>>, vector<64x1xf32>
    %16 = vector.broadcast %15 : vector<64x1xf32> to vector<64x36xf32>
    %17 = arith.addf %14, %16 : vector<64x36xf32>
    %18 = vector.extract_strided_slice %17 {offsets = [0, 0], sizes = [32, 36], strides = [1, 1]} : vector<64x36xf32> to vector<32x36xf32>
    %cst_18 = arith.constant 0.000000e+00 : f32
    %19 = vector.broadcast %cst_18 : f32 to vector<32x36xf32>
    %20 = arith.maximumf %18, %19 : vector<32x36xf32>
    %21 = vector.extract_strided_slice %17 {offsets = [32, 0], sizes = [32, 36], strides = [1, 1]} : vector<64x36xf32> to vector<32x36xf32>
    %c0_19 = arith.constant 0 : index
    %c0_20 = arith.constant 0 : index
    %22 = vector.load %arg14[%c0_19, %c0_20] : memref<1x36xf32, #tpu.memory_space<vmem>>, vector<1x36xf32>
    %23 = vector.broadcast %22 : vector<1x36xf32> to vector<32x36xf32>
    %24 = arith.mulf %20, %23 : vector<32x36xf32>
    %25 = arith.truncf %24 : vector<32x36xf32> to vector<32x36xbf16>
    %cst_21 = arith.constant 0.000000e+00 : bf16
    %26 = vector.broadcast %cst_21 : bf16 to vector<32x1xbf16>
    %c0_22 = arith.constant 0 : index
    %c0_23 = arith.constant 0 : index
    %27 = vector.load %arg18[%c0_22, %c0_23] : memref<32x38xbf16, #tpu.memory_space<vmem>>, vector<32x1xbf16>
    tpu.vector_store %arg18[%c0_22, %c0_23], %26 {strides = array<i32>} : memref<32x38xbf16, #tpu.memory_space<vmem>>, vector<32x1xbf16>,
    %cst_24 = arith.constant 0.000000e+00 : bf16
    %28 = vector.broadcast %cst_24 : bf16 to vector<32x1xbf16>
    %c0_25 = arith.constant 0 : index
    %c37 = arith.constant 37 : index
    %29 = vector.load %arg18[%c0_25, %c37] : memref<32x38xbf16, #tpu.memory_space<vmem>>, vector<32x1xbf16>
    tpu.vector_store %arg18[%c0_25, %c37], %28 {strides = array<i32>} : memref<32x38xbf16, #tpu.memory_space<vmem>>, vector<32x1xbf16>,
    %c0_26 = arith.constant 0 : index
    %c1_27 = arith.constant 1 : index
    %30 = vector.load %arg18[%c0_26, %c1_27] : memref<32x38xbf16, #tpu.memory_space<vmem>>, vector<32x36xbf16>
    tpu.vector_store %arg18[%c0_26, %c1_27], %25 {strides = array<i32>} : memref<32x38xbf16, #tpu.memory_space<vmem>>, vector<32x36xbf16>,
    %c0_28 = arith.constant 0 : index
    %c0_29 = arith.constant 0 : index
    %31 = vector.load %arg18[%c0_28, %c0_29] : memref<32x38xbf16, #tpu.memory_space<vmem>>, vector<32x36xbf16>
    %c0_30 = arith.constant 0 : index
    %c0_31 = arith.constant 0 : index
    %32 = vector.load %arg17[%c0_30, %c0_31] : memref<96x36xbf16, #tpu.memory_space<vmem>>, vector<32x36xbf16>
    tpu.vector_store %arg17[%c0_30, %c0_31], %31 {strides = array<i32>} : memref<96x36xbf16, #tpu.memory_space<vmem>>, vector<32x36xbf16>,
    %c0_32 = arith.constant 0 : index
    %c1_33 = arith.constant 1 : index
    %33 = vector.load %arg18[%c0_32, %c1_33] : memref<32x38xbf16, #tpu.memory_space<vmem>>, vector<32x36xbf16>
    %c32 = arith.constant 32 : index
    %c0_34 = arith.constant 0 : index
    %34 = vector.load %arg17[%c32, %c0_34] : memref<96x36xbf16, #tpu.memory_space<vmem>>, vector<32x36xbf16>
    tpu.vector_store %arg17[%c32, %c0_34], %33 {strides = array<i32>} : memref<96x36xbf16, #tpu.memory_space<vmem>>, vector<32x36xbf16>,
    %c0_35 = arith.constant 0 : index
    %c2_36 = arith.constant 2 : index
    %35 = vector.load %arg18[%c0_35, %c2_36] : memref<32x38xbf16, #tpu.memory_space<vmem>>, vector<32x36xbf16>
    %c64 = arith.constant 64 : index
    %c0_37 = arith.constant 0 : index
    %36 = vector.load %arg17[%c64, %c0_37] : memref<96x36xbf16, #tpu.memory_space<vmem>>, vector<32x36xbf16>
    tpu.vector_store %arg17[%c64, %c0_37], %35 {strides = array<i32>} : memref<96x36xbf16, #tpu.memory_space<vmem>>, vector<32x36xbf16>,
    %c0_38 = arith.constant 0 : index
    %c0_39 = arith.constant 0 : index
    %37 = vector.load %arg5[%c0_38, %c0_39] : memref<32x96xbf16, #tpu.memory_space<vmem>>, vector<32x96xbf16>
    %c0_40 = arith.constant 0 : index
    %c0_41 = arith.constant 0 : index
    %38 = vector.load %arg17[%c0_40, %c0_41] : memref<96x36xbf16, #tpu.memory_space<vmem>>, vector<96x36xbf16>
    %cst_42 = arith.constant dense<0.000000e+00> : vector<32x36xf32>
    %39 = tpu.matmul %37, %38, %cst_42 {dimension_numbers = #tpu.dot_dimension_numbers<[1], [0], [0], [1], [0, 0, 1, 1], [], []>} : vector<32x96xbf16>, vector<96x36xbf16>, vector<32x36xf32> -> vector<32x36xf32>
    %c0_43 = arith.constant 0 : index
    %c0_44 = arith.constant 0 : index
    %40 = vector.load %arg6[%c0_43, %c0_44] : memref<32x1xf32, #tpu.memory_space<vmem>>, vector<32x1xf32>
    %41 = vector.broadcast %40 : vector<32x1xf32> to vector<32x36xf32>
    %42 = arith.mulf %41, %39 : vector<32x36xf32>
    %c0_45 = arith.constant 0 : index
    %c0_46 = arith.constant 0 : index
    %43 = vector.load %arg7[%c0_45, %c0_46] : memref<32x1xf32, #tpu.memory_space<vmem>>, vector<32x1xf32>
    %44 = vector.broadcast %43 : vector<32x1xf32> to vector<32x36xf32>
    %45 = arith.addf %42, %44 : vector<32x36xf32>
    %c0_47 = arith.constant 0 : index
    %c0_48 = arith.constant 0 : index
    %46 = vector.load %arg12[%c0_47, %c0_48] : memref<36x2xf32, #tpu.memory_space<vmem>>, vector<36x2xf32>
    %cst_49 = arith.constant dense<0.000000e+00> : vector<32x2xf32>
    %47 = tpu.matmul %45, %46, %cst_49 {dimension_numbers = #tpu.dot_dimension_numbers<[1], [0], [0], [1], [0, 0, 1, 1], [], []>} : vector<32x36xf32>, vector<36x2xf32>, vector<32x2xf32> -> vector<32x2xf32>
    %c0_50 = arith.constant 0 : index
    %c0_51 = arith.constant 0 : index
    %48 = vector.load %arg8[%c0_50, %c0_51] : memref<8x32xf32, #tpu.memory_space<vmem>>, vector<8x32xf32>
    %cst_52 = arith.constant dense<0.000000e+00> : vector<8x2xf32>
    %49 = tpu.matmul %48, %47, %cst_52 {dimension_numbers = #tpu.dot_dimension_numbers<[1], [0], [0], [1], [0, 0, 1, 1], [], []>} : vector<8x32xf32>, vector<32x2xf32>, vector<8x2xf32> -> vector<8x2xf32>
    %c0_53 = arith.constant 0 : index
    %c0_54 = arith.constant 0 : index
    %50 = vector.load %arg9[%c0_53, %c0_54] : memref<8x1xf32, #tpu.memory_space<vmem>>, vector<8x1xf32>
    %51 = vector.broadcast %50 : vector<8x1xf32> to vector<8x2xf32>
    %52 = arith.addf %49, %51 : vector<8x2xf32>
    %cst_55 = arith.constant 0.000000e+00 : f32
    %53 = vector.broadcast %cst_55 : f32 to vector<8x2xf32>
    %54 = arith.maximumf %52, %53 : vector<8x2xf32>
    %c0_56 = arith.constant 0 : index
    %c0_57 = arith.constant 0 : index
    %55 = vector.load %arg10[%c0_56, %c0_57] : memref<32x8xf32, #tpu.memory_space<vmem>>, vector<32x8xf32>
    %cst_58 = arith.constant dense<0.000000e+00> : vector<32x2xf32>
    %56 = tpu.matmul %55, %54, %cst_58 {dimension_numbers = #tpu.dot_dimension_numbers<[1], [0], [0], [1], [0, 0, 1, 1], [], []>} : vector<32x8xf32>, vector<8x2xf32>, vector<32x2xf32> -> vector<32x2xf32>
    %c0_59 = arith.constant 0 : index
    %c0_60 = arith.constant 0 : index
    %57 = vector.load %arg11[%c0_59, %c0_60] : memref<32x1xf32, #tpu.memory_space<vmem>>, vector<32x1xf32>
    %58 = vector.broadcast %57 : vector<32x1xf32> to vector<32x2xf32>
    %59 = arith.addf %56, %58 : vector<32x2xf32>
    %60 = arith.negf %59 : vector<32x2xf32>
    %61 = math.exp %60 : vector<32x2xf32>
    %cst_61 = arith.constant 1.000000e+00 : f32
    %62 = vector.broadcast %cst_61 : f32 to vector<32x2xf32>
    %63 = arith.addf %62, %61 : vector<32x2xf32>
    %64 = arith.divf %62, %63 : vector<32x2xf32>
    %c0_62 = arith.constant 0 : index
    %c0_63 = arith.constant 0 : index
    %65 = vector.load %arg13[%c0_62, %c0_63] : memref<2x36xf32, #tpu.memory_space<vmem>>, vector<2x36xf32>
    %cst_64 = arith.constant dense<0.000000e+00> : vector<32x36xf32>
    %66 = tpu.matmul %64, %65, %cst_64 {dimension_numbers = #tpu.dot_dimension_numbers<[1], [0], [0], [1], [0, 0, 1, 1], [], []>} : vector<32x2xf32>, vector<2x36xf32>, vector<32x36xf32> -> vector<32x36xf32>
    %67 = arith.mulf %45, %66 : vector<32x36xf32>
    %68 = arith.addf %67, %21 : vector<32x36xf32>
    %cst_65 = arith.constant 0.000000e+00 : f32
    %69 = vector.broadcast %cst_65 : f32 to vector<32x36xf32>
    %70 = arith.maximumf %68, %69 : vector<32x36xf32>
    %c0_66 = arith.constant 0 : index
    %c0_67 = arith.constant 0 : index
    %c0_68 = arith.constant 0 : index
    %71 = vector.load %arg15[%c0_66, %c0_67, %c0_68] : memref<1x32x36xf32, #tpu.memory_space<vmem>>, vector<1x32x36xf32>
    %72 = vector.shape_cast %71 : vector<1x32x36xf32> to vector<32x36xf32>
    %73 = vector.shape_cast %70 : vector<32x36xf32> to vector<1x32x36xf32>
    tpu.vector_store %arg15[%c0_66, %c0_67, %c0_68], %73 {strides = array<i32>} : memref<1x32x36xf32, #tpu.memory_space<vmem>>, vector<1x32x36xf32>,
    return
  }
  func.func @transform_0(%arg0: i32) -> (i32, i32, i32) {
    %c0_i32 = arith.constant 0 : i32
    %c0_i32_0 = arith.constant 0 : i32
    %c0_i32_1 = arith.constant 0 : i32
    return %arg0, %c0_i32, %c0_i32_0 : i32, i32, i32
  }
  func.func @transform_1(%arg0: i32) -> (i32, i32) {
    %c0_i32 = arith.constant 0 : i32
    %c0_i32_0 = arith.constant 0 : i32
    %c0_i32_1 = arith.constant 0 : i32
    return %c0_i32, %c0_i32_0 : i32, i32
  }
  func.func @transform_2(%arg0: i32) -> (i32, i32) {
    %c0_i32 = arith.constant 0 : i32
    %c0_i32_0 = arith.constant 0 : i32
    %c0_i32_1 = arith.constant 0 : i32
    return %c0_i32, %c0_i32_0 : i32, i32
  }
  func.func @transform_3(%arg0: i32) -> (i32, i32) {
    %c0_i32 = arith.constant 0 : i32
    %c0_i32_0 = arith.constant 0 : i32
    %c0_i32_1 = arith.constant 0 : i32
    return %c0_i32, %c0_i32_0 : i32, i32
  }
  func.func @transform_4(%arg0: i32) -> (i32, i32) {
    %c0_i32 = arith.constant 0 : i32
    %c0_i32_0 = arith.constant 0 : i32
    %c0_i32_1 = arith.constant 0 : i32
    return %c0_i32, %c0_i32_0 : i32, i32
  }
  func.func @transform_5(%arg0: i32) -> (i32, i32) {
    %c0_i32 = arith.constant 0 : i32
    %c0_i32_0 = arith.constant 0 : i32
    %c0_i32_1 = arith.constant 0 : i32
    return %c0_i32, %c0_i32_0 : i32, i32
  }
  func.func @transform_6(%arg0: i32) -> (i32, i32) {
    %c0_i32 = arith.constant 0 : i32
    %c0_i32_0 = arith.constant 0 : i32
    %c0_i32_1 = arith.constant 0 : i32
    return %c0_i32, %c0_i32_0 : i32, i32
  }
  func.func @transform_7(%arg0: i32) -> (i32, i32) {
    %c0_i32 = arith.constant 0 : i32
    %c0_i32_0 = arith.constant 0 : i32
    %c0_i32_1 = arith.constant 0 : i32
    return %c0_i32, %c0_i32_0 : i32, i32
  }
  func.func @transform_8(%arg0: i32) -> (i32, i32) {
    %c0_i32 = arith.constant 0 : i32
    %c0_i32_0 = arith.constant 0 : i32
    %c0_i32_1 = arith.constant 0 : i32
    return %c0_i32, %c0_i32_0 : i32, i32
  }
  func.func @transform_9(%arg0: i32) -> (i32, i32) {
    %c0_i32 = arith.constant 0 : i32
    %c0_i32_0 = arith.constant 0 : i32
    %c0_i32_1 = arith.constant 0 : i32
    return %c0_i32, %c0_i32_0 : i32, i32
  }
  func.func @transform_10(%arg0: i32) -> (i32, i32) {
    %c0_i32 = arith.constant 0 : i32
    %c0_i32_0 = arith.constant 0 : i32
    %c0_i32_1 = arith.constant 0 : i32
    return %c0_i32, %c0_i32_0 : i32, i32
  }
  func.func @transform_11(%arg0: i32) -> (i32, i32) {
    %c0_i32 = arith.constant 0 : i32
    %c0_i32_0 = arith.constant 0 : i32
    %c0_i32_1 = arith.constant 0 : i32
    return %c0_i32, %c0_i32_0 : i32, i32
  }
  func.func @transform_12(%arg0: i32) -> (i32, i32) {
    %c0_i32 = arith.constant 0 : i32
    %c0_i32_0 = arith.constant 0 : i32
    %c0_i32_1 = arith.constant 0 : i32
    return %c0_i32, %c0_i32_0 : i32, i32
  }
  func.func @transform_13(%arg0: i32) -> (i32, i32) {
    %c0_i32 = arith.constant 0 : i32
    %c0_i32_0 = arith.constant 0 : i32
    %c0_i32_1 = arith.constant 0 : i32
    return %c0_i32, %c0_i32_0 : i32, i32
  }
  func.func @transform_14(%arg0: i32) -> (i32, i32, i32) {
    %c0_i32 = arith.constant 0 : i32
    %c0_i32_0 = arith.constant 0 : i32
    %c0_i32_1 = arith.constant 0 : i32
    return %arg0, %c0_i32, %c0_i32_0 : i32, i32, i32
  }
}

</mosaic_0001>

<llo_original>
// kernel: basic_block_1d.1
$region0: #{basic_block_1d.1}
  #allocation0 [shape = 'u32[]', space=smem, size = 0x4, offset = 0x4, fixed_abs, tag = 'smem constant byte address 0x4 - core index']
  #allocation1 [shape = 'u32[144,128]{1,0:T(1,128)}', space=vmem, size = 0x12000, scoped, tag = 'internal scratch']
  #allocation2 [shape = 'bf16[24,36]{1,0:T(8,128)(2,1)}', space=vmem, size = 0x1800, scoped, tag = 'scratch operand']
  #allocation3 [shape = 'bf16[96,36]{1,0:T(8,128)(2,1)}', space=vmem, size = 0x6000, scoped, tag = 'scratch operand']
  #allocation4 [shape = 'bf16[32,38]{1,0:T(8,128)(2,1)}', space=vmem, size = 0x2000, scoped, tag = 'scratch operand']
  %s0 = inlined_call_operand.vmem [shape: bf16[1,8,38], index: 0, kind: input, shape index: {}]
  %s1 = inlined_call_operand.vmem [shape: bf16[64,24], index: 1, kind: input, shape index: {}]
  %s2 = inlined_call_operand.vmem [shape: f32[64,1], index: 2, kind: input, shape index: {}]
  %s3 = inlined_call_operand.vmem [shape: f32[64,1], index: 3, kind: input, shape index: {}]
  %s4 = inlined_call_operand.vmem [shape: bf16[32,96], index: 4, kind: input, shape index: {}]
  %s5 = inlined_call_operand.vmem [shape: f32[32,1], index: 5, kind: input, shape index: {}]
  %s6 = inlined_call_operand.vmem [shape: f32[32,1], index: 6, kind: input, shape index: {}]
  %s7 = inlined_call_operand.vmem [shape: f32[8,32], index: 7, kind: input, shape index: {}]
  %s8 = inlined_call_operand.vmem [shape: f32[8,1], index: 8, kind: input, shape index: {}]
  %s9 = inlined_call_operand.vmem [shape: f32[32,8], index: 9, kind: input, shape index: {}]
  %s10 = inlined_call_operand.vmem [shape: f32[32,1], index: 10, kind: input, shape index: {}]
  %s11 = inlined_call_operand.vmem [shape: f32[36,2], index: 11, kind: input, shape index: {}]
  %s12 = inlined_call_operand.vmem [shape: f32[2,36], index: 12, kind: input, shape index: {}]
  %s13 = inlined_call_operand.vmem [shape: f32[1,36], index: 13, kind: input, shape index: {}]
  %s14 = inlined_call_operand.vmem [shape: f32[1,32,36], index: 14, kind: output, shape index: {}]
  %s15 = sld [smem:[#allocation0]]
  $region66: #{basic_block_1d.1} parent=0
    _
  %s17 = ssub.s32 1, %s15
  %s18 = scalar_select 0, %s17, %s15
  // Predicated region
  $region2: #{basic_block_1d.1} parent=0 // pred_check
    _
  $region3: #{basic_block_1d.1} parent=0 // pred_check_branch
    %20 = sbr.rel (0) target = $region5
  $region4: #{basic_block_1d.1} parent=0 // pred_region
    _
  $region5: #{basic_block_1d.1} parent=0 // pred_fallthru
    _
  // Predicated region
  $region6: #{basic_block_1d.1} parent=0 // pred_check
    _
  $region7: #{basic_block_1d.1} parent=0 // pred_check_branch
    %22 = sbr.rel (0) target = $region9
  $region8: #{basic_block_1d.1} parent=0 // pred_region
    _
  $region9: #{basic_block_1d.1} parent=0 // pred_fallthru
    _
  // Predicated region
  $region10: #{basic_block_1d.1} parent=0 // pred_check
    _
  $region11: #{basic_block_1d.1} parent=0 // pred_check_branch
    %24 = sbr.rel (0) target = $region13
  $region12: #{basic_block_1d.1} parent=0 // pred_region
    _
  $region13: #{basic_block_1d.1} parent=0 // pred_fallthru
    _
  // Predicated region
  $region14: #{basic_block_1d.1} parent=0 // pred_check
    _
  $region15: #{basic_block_1d.1} parent=0 // pred_check_branch
    %26 = sbr.rel (0) target = $region17
  $region16: #{basic_block_1d.1} parent=0 // pred_region
    _
  $region17: #{basic_block_1d.1} parent=0 // pred_fallthru
    _
  // Predicated region
  $region18: #{basic_block_1d.1} parent=0 // pred_check
    _
  $region19: #{basic_block_1d.1} parent=0 // pred_check_branch
    %28 = sbr.rel (0) target = $region21
  $region20: #{basic_block_1d.1} parent=0 // pred_region
    _
  $region21: #{basic_block_1d.1} parent=0 // pred_fallthru
    _
  // Predicated region
  $region22: #{basic_block_1d.1} parent=0 // pred_check
    _
  $region23: #{basic_block_1d.1} parent=0 // pred_check_branch
    %30 = sbr.rel (0) target = $region25
  $region24: #{basic_block_1d.1} parent=0 // pred_region
    _
  $region25: #{basic_block_1d.1} parent=0 // pred_fallthru
    _
  // Predicated region
  $region26: #{basic_block_1d.1} parent=0 // pred_check
    _
  $region27: #{basic_block_1d.1} parent=0 // pred_check_branch
    %32 = sbr.rel (0) target = $region29
  $region28: #{basic_block_1d.1} parent=0 // pred_region
    _
  $region29: #{basic_block_1d.1} parent=0 // pred_fallthru
    _
  // Predicated region
  $region30: #{basic_block_1d.1} parent=0 // pred_check
    _
  $region31: #{basic_block_1d.1} parent=0 // pred_check_branch
    %34 = sbr.rel (0) target = $region33
  $region32: #{basic_block_1d.1} parent=0 // pred_region
    _
  $region33: #{basic_block_1d.1} parent=0 // pred_fallthru
    _
  // Predicated region
  $region34: #{basic_block_1d.1} parent=0 // pred_check
    _
  $region35: #{basic_block_1d.1} parent=0 // pred_check_branch
    %36 = sbr.rel (0) target = $region37
  $region36: #{basic_block_1d.1} parent=0 // pred_region
    _
  $region37: #{basic_block_1d.1} parent=0 // pred_fallthru
    _
  // Predicated region
  $region38: #{basic_block_1d.1} parent=0 // pred_check
    _
  $region39: #{basic_block_1d.1} parent=0 // pred_check_branch
    %38 = sbr.rel (0) target = $region41
  $region40: #{basic_block_1d.1} parent=0 // pred_region
    _
  $region41: #{basic_block_1d.1} parent=0 // pred_fallthru
    _
  // Predicated region
  $region42: #{basic_block_1d.1} parent=0 // pred_check
    _
  $region43: #{basic_block_1d.1} parent=0 // pred_check_branch
    %40 = sbr.rel (0) target = $region45
  $region44: #{basic_block_1d.1} parent=0 // pred_region
    _
  $region45: #{basic_block_1d.1} parent=0 // pred_fallthru
    _
  // Predicated region
  $region46: #{basic_block_1d.1} parent=0 // pred_check
    _
  $region47: #{basic_block_1d.1} parent=0 // pred_check_branch
    %42 = sbr.rel (0) target = $region49
  $region48: #{basic_block_1d.1} parent=0 // pred_region
    _
  $region49: #{basic_block_1d.1} parent=0 // pred_fallthru
    _
  // Predicated region
  $region50: #{basic_block_1d.1} parent=0 // pred_check
    _
  $region51: #{basic_block_1d.1} parent=0 // pred_check_branch
    %44 = sbr.rel (0) target = $region53
  $region52: #{basic_block_1d.1} parent=0 // pred_region
    _
  $region53: #{basic_block_1d.1} parent=0 // pred_fallthru
    _
  // Predicated region
  $region54: #{basic_block_1d.1} parent=0 // pred_check
    _
  $region55: #{basic_block_1d.1} parent=0 // pred_check_branch
    %46 = sbr.rel (0) target = $region57
  $region56: #{basic_block_1d.1} parent=0 // pred_region
    _
  $region57: #{basic_block_1d.1} parent=0 // pred_fallthru
    _
  %v48 = vld [vmem:[%s0] sm:$0xf]
  %vm49 = vcmask 289792
  %50 = vst.msk [vmem:[#allocation2] sm:$0xf] %vm49, %v48
  %v51 = vld [vmem:[%s0] sm:$0xf]
  %53 = vrot.lane.b32.xlu0 %v51, 127
  %v54 = vpop.permute.xlu0 %53
  %56 = vst.msk [vmem:[#allocation2 + $0x4] sm:$0xf] %vm49, %v54
  %v57 = vld [vmem:[%s0] sm:$0xf]
  %59 = vrot.lane.b32.xlu0 %v57, 126
  %v60 = vpop.permute.xlu0 %59
  %62 = vst.msk [vmem:[#allocation2 + $0x8] sm:$0xf] %vm49, %v60
  %v63 = vld [vmem:[%s1] sm:$0xf]
  %v64 = vld [vmem:[%s1 + $0x4] sm:$0xf]
  %v65 = vld [vmem:[%s1 + $0x8] sm:$0xf]
  %v66 = vld [vmem:[%s1 + $0xc] sm:$0xf]
  %v67 = vld [vmem:[%s1 + $0x10] sm:$0xf]
  %v68 = vld [vmem:[%s1 + $0x14] sm:$0xf]
  %v69 = vld [vmem:[%s1 + $0x18] sm:$0xf]
  %v70 = vld [vmem:[%s1 + $0x1c] sm:$0xf]
  %v71 = vld [vmem:[#allocation2] sm:$0xf]
  %v72 = vld [vmem:[#allocation2 + $0x4] sm:$0xf]
  %v73 = vld [vmem:[#allocation2 + $0x8] sm:$0xf]
  %v82 = vunpack.c.l.b16 %v63
  %v83 = vunpack.c.l.b16 %v64
  %v84 = vunpack.c.l.b16 %v65
  %v85 = vunpack.c.l.b16 %v66
  %v86 = vunpack.c.l.b16 %v67
  %v87 = vunpack.c.l.b16 %v68
  %v88 = vunpack.c.l.b16 %v69
  %v89 = vunpack.c.l.b16 %v70
  %v90 = vpack.c.b16 %v83, %v82
  %v91 = vpack.c.b16 %v85, %v84
  %v92 = vpack.c.b16 %v87, %v86
  %v93 = vpack.c.b16 %v89, %v88
  %v97 = vunpack.c.l.b16 %v71
  %v98 = vunpack.c.l.b16 %v72
  %v99 = vunpack.c.l.b16 %v73
  %v100 = vpack.c.b16 %v98, %v97
  %v101 = vpack.c.b16 %v99, %v99
  %vm103 = vcmask 195584
  %v105 = vsel %vm103, %v90, 0
  %v108 = vsel %vm103, %v91, 0
  %v111 = vsel %vm103, %v92, 0
  %v114 = vsel %vm103, %v93, 0
  %vm116 = vcmask 1043456
  %v118 = vsel %vm116, %v101, 0
  %120 = vmatprep.subr.bf16.mxu0 0
  %121 = vmatpush1.bf16.msra.mxu0 0
  %122 = vmatprep.subr.bf16.mxu0 0
  %123 = vmatpush1.bf16.msra.mxu0 0
  %124 = vmatprep.subr.bf16.mxu0 0
  %125 = vmatpush1.bf16.msra.mxu0 0
  %126 = vmatprep.subr.bf16.mxu0 0
  %127 = vmatpush1.bf16.msra.mxu0 0
  %128 = vmatprep.subr.bf16.mxu0 0
  %129 = vmatpush1.bf16.msra.mxu0 0
  %130 = vmatprep.subr.bf16.mxu0 0
  %131 = vmatpush1.bf16.msra.mxu0 0
  %132 = vmatprep.subr.bf16.mxu0 0
  %133 = vmatpush1.bf16.msra.mxu0 %v118
  %134 = vmatprep.subr.bf16.mxu0 0
  %135 = vmatpush1.bf16.msra.mxu0 %v100
  %136 = vmatprep.subr.bf16.mxu0 0
  %137 = vmatpush2.bf16.msra.mxu0 0
  %138 = vmatprep.subr.bf16.mxu0 0
  %139 = vmatpush2.bf16.msra.mxu0 0
  %140 = vmatprep.subr.bf16.mxu0 0
  %141 = vmatpush2.bf16.msra.mxu0 0
  %142 = vmatprep.subr.bf16.mxu0 0
  %143 = vmatpush2.bf16.msra.mxu0 0
  %144 = vmatprep.subr.bf16.mxu0 0
  %145 = vmatpush2.bf16.msra.mxu0 0
  %146 = vmatprep.subr.bf16.mxu0 0
  %147 = vmatpush2.bf16.msra.mxu0 0
  %148 = vmatprep.subr.bf16.mxu0 0
  %149 = vmatpush2.bf16.msra.mxu0 0
  %150 = vmatprep.subr.bf16.mxu0 0
  %151 = vmatpush2.bf16.msra.mxu0 0
  %152 = vmatprep.mubr.bf16.mxu0 0
  %153 = vmatmul.mubr.bf16.gmra.mxu0 %v105
  %v154 = vpop.f32.mrf.mxu0
  %v155 = vadd.f32 0.0, %v154
  %v156 = vpop.f32.mrf.mxu0
  %v157 = vpop.f32.mrf.mxu0
  %v158 = vadd.f32 0.0, %v157
  %v159 = vpop.f32.mrf.mxu0
  %160 = vmatprep.mubr.bf16.mxu0 0
  %161 = vmatmul.mubr.bf16.gmra.mxu0 %v108
  %v162 = vpop.f32.mrf.mxu0
  %v163 = vadd.f32 0.0, %v162
  %v164 = vpop.f32.mrf.mxu0
  %v165 = vpop.f32.mrf.mxu0
  %v166 = vadd.f32 0.0, %v165
  %v167 = vpop.f32.mrf.mxu0
  %168 = vmatprep.mubr.bf16.mxu0 0
  %169 = vmatmul.mubr.bf16.gmra.mxu0 %v111
  %v170 = vpop.f32.mrf.mxu0
  %v171 = vadd.f32 0.0, %v170
  %v172 = vpop.f32.mrf.mxu0
  %v173 = vpop.f32.mrf.mxu0
  %v174 = vadd.f32 0.0, %v173
  %v175 = vpop.f32.mrf.mxu0
  %176 = vmatprep.mubr.bf16.mxu0 0
  %177 = vmatmul.mubr.bf16.gmra.mxu0 %v114
  %v178 = vpop.f32.mrf.mxu0
  %v179 = vadd.f32 0.0, %v178
  %v180 = vpop.f32.mrf.mxu0
  %v181 = vpop.f32.mrf.mxu0
  %v182 = vadd.f32 0.0, %v181
  %v183 = vpop.f32.mrf.mxu0
  %184 = vdwg.mxu0
  %v185 = vld [vmem:[%s2] sm:$0xff]
  %v186 = vld [vmem:[%s2 + $0x8] sm:$0xff]
  %v187 = vld [vmem:[%s2 + $0x10] sm:$0xff]
  %v188 = vld [vmem:[%s2 + $0x18] sm:$0xff]
  %v189 = vld [vmem:[%s2 + $0x20] sm:$0xff]
  %v190 = vld [vmem:[%s2 + $0x28] sm:$0xff]
  %v191 = vld [vmem:[%s2 + $0x30] sm:$0xff]
  %v192 = vld [vmem:[%s2 + $0x38] sm:$0xff]
  %194 = vset.pattern.permute.xlu0 0
  %195 = vperm.xlu0 %194, %v185
  %v196 = vpop.permute.xlu0 %195
  %199 = vset.pattern.permute.xlu0 0
  %200 = vperm.xlu0 %199, %v186
  %v201 = vpop.permute.xlu0 %200
  %204 = vset.pattern.permute.xlu0 0
  %205 = vperm.xlu0 %204, %v187
  %v206 = vpop.permute.xlu0 %205
  %209 = vset.pattern.permute.xlu0 0
  %210 = vperm.xlu0 %209, %v188
  %v211 = vpop.permute.xlu0 %210
  %214 = vset.pattern.permute.xlu0 0
  %215 = vperm.xlu0 %214, %v189
  %v216 = vpop.permute.xlu0 %215
  %219 = vset.pattern.permute.xlu0 0
  %220 = vperm.xlu0 %219, %v190
  %v221 = vpop.permute.xlu0 %220
  %224 = vset.pattern.permute.xlu0 0
  %225 = vperm.xlu0 %224, %v191
  %v226 = vpop.permute.xlu0 %225
  %229 = vset.pattern.permute.xlu0 0
  %230 = vperm.xlu0 %229, %v192
  %v231 = vpop.permute.xlu0 %230
  %v233 = vmul.f32 %v196, %v155
  %v234 = vmul.f32 %v201, %v158
  %v235 = vmul.f32 %v206, %v163
  %v236 = vmul.f32 %v211, %v166
  %v237 = vmul.f32 %v216, %v171
  %v238 = vmul.f32 %v221, %v174
  %v239 = vmul.f32 %v226, %v179
  %v240 = vmul.f32 %v231, %v182
  %v241 = vld [vmem:[%s3] sm:$0xff]
  %v242 = vld [vmem:[%s3 + $0x8] sm:$0xff]
  %v243 = vld [vmem:[%s3 + $0x10] sm:$0xff]
  %v244 = vld [vmem:[%s3 + $0x18] sm:$0xff]
  %v245 = vld [vmem:[%s3 + $0x20] sm:$0xff]
  %v246 = vld [vmem:[%s3 + $0x28] sm:$0xff]
  %v247 = vld [vmem:[%s3 + $0x30] sm:$0xff]
  %v248 = vld [vmem:[%s3 + $0x38] sm:$0xff]
  %250 = vset.pattern.permute.xlu0 0
  %251 = vperm.xlu0 %250, %v241
  %v252 = vpop.permute.xlu0 %251
  %255 = vset.pattern.permute.xlu0 0
  %256 = vperm.xlu0 %255, %v242
  %v257 = vpop.permute.xlu0 %256
  %260 = vset.pattern.permute.xlu0 0
  %261 = vperm.xlu0 %260, %v243
  %v262 = vpop.permute.xlu0 %261
  %265 = vset.pattern.permute.xlu0 0
  %266 = vperm.xlu0 %265, %v244
  %v267 = vpop.permute.xlu0 %266
  %270 = vset.pattern.permute.xlu0 0
  %271 = vperm.xlu0 %270, %v245
  %v272 = vpop.permute.xlu0 %271
  %275 = vset.pattern.permute.xlu0 0
  %276 = vperm.xlu0 %275, %v246
  %v277 = vpop.permute.xlu0 %276
  %280 = vset.pattern.permute.xlu0 0
  %281 = vperm.xlu0 %280, %v247
  %v282 = vpop.permute.xlu0 %281
  %285 = vset.pattern.permute.xlu0 0
  %286 = vperm.xlu0 %285, %v248
  %v287 = vpop.permute.xlu0 %286
  %v289 = vadd.f32 %v233, %v252
  %v290 = vadd.f32 %v234, %v257
  %v291 = vadd.f32 %v235, %v262
  %v292 = vadd.f32 %v236, %v267
  %v293 = vadd.f32 %v237, %v272
  %v294 = vadd.f32 %v238, %v277
  %v295 = vadd.f32 %v239, %v282
  %v296 = vadd.f32 %v240, %v287
  %v297 = vmax.f32 %v289, 0.0
  %v298 = vmax.f32 %v290, 0.0
  %v299 = vmax.f32 %v291, 0.0
  %v300 = vmax.f32 %v292, 0.0
  %v301 = vld [vmem:[%s13] sm:$0x1]
  %v303 = vlaneseq
  %v304 = vshrl.u32 %v303, 7
  %v305 = vsub.s32 0, %v304
  %v306 = vrot.slane %v301, %v305
  %v308 = vmul.f32 %v297, %v306
  %v309 = vmul.f32 %v298, %v306
  %v310 = vmul.f32 %v299, %v306
  %v311 = vmul.f32 %v300, %v306
  %v312 = vpack.c.bf16 %v309, %v308
  %v313 = vpack.c.bf16 %v311, %v310
  %vm314 = vcmask 3072
  %315 = vst.msk [vmem:[#allocation4] sm:$0xf] %vm314, 0
  %316 = vst.msk [vmem:[#allocation4 + $0x4] sm:$0xf] %vm314, 0
  %317 = vst.msk [vmem:[#allocation4 + $0x8] sm:$0xf] %vm314, 0
  %318 = vst.msk [vmem:[#allocation4 + $0xc] sm:$0xf] %vm314, 0
  %vm319 = vcmask 306472
  %320 = vst.msk [vmem:[#allocation4] sm:$0xf] %vm319, 0
  %321 = vst.msk [vmem:[#allocation4 + $0x4] sm:$0xf] %vm319, 0
  %322 = vst.msk [vmem:[#allocation4 + $0x8] sm:$0xf] %vm319, 0
  %323 = vst.msk [vmem:[#allocation4 + $0xc] sm:$0xf] %vm319, 0
  %v326 = vunpack.c.l.b16 %v312
  %v327 = vunpack.c.h.b16 %v312
  %v328 = vunpack.c.l.b16 %v313
  %v329 = vunpack.c.h.b16 %v313
  %v330 = vpack.c.b16 %v326, %v326
  %v331 = vpack.c.b16 %v327, %v327
  %v332 = vpack.c.b16 %v328, %v328
  %v333 = vpack.c.b16 %v329, %v329
  %334 = vrot.lane.b32.xlu0 %v330, 1
  %v335 = vpop.permute.xlu0 %334
  %336 = vrot.lane.b32.xlu0 %v331, 1
  %v337 = vpop.permute.xlu0 %336
  %338 = vrot.lane.b32.xlu0 %v332, 1
  %v339 = vpop.permute.xlu0 %338
  %340 = vrot.lane.b32.xlu0 %v333, 1
  %v341 = vpop.permute.xlu0 %340
  %vm346 = vcmask 297992
  %347 = vst.msk [vmem:[#allocation4] sm:$0xf] %vm346, %v335
  %348 = vst.msk [vmem:[#allocation4 + $0x4] sm:$0xf] %vm346, %v337
  %349 = vst.msk [vmem:[#allocation4 + $0x8] sm:$0xf] %vm346, %v339
  %350 = vst.msk [vmem:[#allocation4 + $0xc] sm:$0xf] %vm346, %v341
  %v351 = vld [vmem:[#allocation4] sm:$0xf]
  %v352 = vld [vmem:[#allocation4 + $0x4] sm:$0xf]
  %v353 = vld [vmem:[#allocation4 + $0x8] sm:$0xf]
  %v354 = vld [vmem:[#allocation4 + $0xc] sm:$0xf]
  %355 = vst.msk [vmem:[#allocation3] sm:$0xf] %vm49, %v351
  %356 = vst.msk [vmem:[#allocation3 + $0x4] sm:$0xf] %vm49, %v352
  %357 = vst.msk [vmem:[#allocation3 + $0x8] sm:$0xf] %vm49, %v353
  %358 = vst.msk [vmem:[#allocation3 + $0xc] sm:$0xf] %vm49, %v354
  %v359 = vld [vmem:[#allocation4] sm:$0xf]
  %v360 = vld [vmem:[#allocation4 + $0x4] sm:$0xf]
  %v361 = vld [vmem:[#allocation4 + $0x8] sm:$0xf]
  %v362 = vld [vmem:[#allocation4 + $0xc] sm:$0xf]
  %367 = vrot.lane.b32.xlu0 %v359, 127
  %v368 = vpop.permute.xlu0 %367
  %369 = vrot.lane.b32.xlu0 %v360, 127
  %v370 = vpop.permute.xlu0 %369
  %371 = vrot.lane.b32.xlu0 %v361, 127
  %v372 = vpop.permute.xlu0 %371
  %373 = vrot.lane.b32.xlu0 %v362, 127
  %v374 = vpop.permute.xlu0 %373
  %379 = vst.msk [vmem:[#allocation3 + $0x10] sm:$0xf] %vm49, %v368
  %380 = vst.msk [vmem:[#allocation3 + $0x14] sm:$0xf] %vm49, %v370
  %381 = vst.msk [vmem:[#allocation3 + $0x18] sm:$0xf] %vm49, %v372
  %382 = vst.msk [vmem:[#allocation3 + $0x1c] sm:$0xf] %vm49, %v374
  %v383 = vld [vmem:[#allocation4] sm:$0xf]
  %v384 = vld [vmem:[#allocation4 + $0x4] sm:$0xf]
  %v385 = vld [vmem:[#allocation4 + $0x8] sm:$0xf]
  %v386 = vld [vmem:[#allocation4 + $0xc] sm:$0xf]
  %391 = vrot.lane.b32.xlu0 %v383, 126
  %v392 = vpop.permute.xlu0 %391
  %393 = vrot.lane.b32.xlu0 %v384, 126
  %v394 = vpop.permute.xlu0 %393
  %395 = vrot.lane.b32.xlu0 %v385, 126
  %v396 = vpop.permute.xlu0 %395
  %397 = vrot.lane.b32.xlu0 %v386, 126
  %v398 = vpop.permute.xlu0 %397
  %403 = vst.msk [vmem:[#allocation3 + $0x20] sm:$0xf] %vm49, %v392
  %404 = vst.msk [vmem:[#allocation3 + $0x24] sm:$0xf] %vm49, %v394
  %405 = vst.msk [vmem:[#allocation3 + $0x28] sm:$0xf] %vm49, %v396
  %406 = vst.msk [vmem:[#allocation3 + $0x2c] sm:$0xf] %vm49, %v398
  %v407 = vld [vmem:[%s4] sm:$0xf]
  %v408 = vld [vmem:[%s4 + $0x4] sm:$0xf]
  %v409 = vld [vmem:[%s4 + $0x8] sm:$0xf]
  %v410 = vld [vmem:[%s4 + $0xc] sm:$0xf]
  %v411 = vld [vmem:[#allocation3] sm:$0xf]
  %v412 = vld [vmem:[#allocation3 + $0x4] sm:$0xf]
  %v413 = vld [vmem:[#allocation3 + $0x8] sm:$0xf]
  %v414 = vld [vmem:[#allocation3 + $0xc] sm:$0xf]
  %v415 = vld [vmem:[#allocation3 + $0x10] sm:$0xf]
  %v416 = vld [vmem:[#allocation3 + $0x14] sm:$0xf]
  %v417 = vld [vmem:[#allocation3 + $0x18] sm:$0xf]
  %v418 = vld [vmem:[#allocation3 + $0x1c] sm:$0xf]
  %v419 = vld [vmem:[#allocation3 + $0x20] sm:$0xf]
  %v420 = vld [vmem:[#allocation3 + $0x24] sm:$0xf]
  %v421 = vld [vmem:[#allocation3 + $0x28] sm:$0xf]
  %v422 = vld [vmem:[#allocation3 + $0x2c] sm:$0xf]
  %v427 = vunpack.c.l.b16 %v407
  %v428 = vunpack.c.l.b16 %v408
  %v429 = vunpack.c.l.b16 %v409
  %v430 = vunpack.c.l.b16 %v410
  %v431 = vpack.c.b16 %v428, %v427
  %v432 = vpack.c.b16 %v430, %v429
  %v445 = vunpack.c.l.b16 %v411
  %v446 = vunpack.c.l.b16 %v412
  %v447 = vunpack.c.l.b16 %v413
  %v448 = vunpack.c.l.b16 %v414
  %v449 = vunpack.c.l.b16 %v415
  %v450 = vunpack.c.l.b16 %v416
  %v451 = vunpack.c.l.b16 %v417
  %v452 = vunpack.c.l.b16 %v418
  %v453 = vunpack.c.l.b16 %v419
  %v454 = vunpack.c.l.b16 %v420
  %v455 = vunpack.c.l.b16 %v421
  %v456 = vunpack.c.l.b16 %v422
  %v457 = vpack.c.b16 %v446, %v445
  %v458 = vpack.c.b16 %v448, %v447
  %v459 = vpack.c.b16 %v450, %v449
  %v460 = vpack.c.b16 %v452, %v451
  %v461 = vpack.c.b16 %v454, %v453
  %v462 = vpack.c.b16 %v456, %v455
  %vm469 = vcmask 785408
  %v471 = vsel %vm469, %v431, 0
  %v474 = vsel %vm469, %v432, 0
  %476 = vmatprep.subr.bf16.mxu0 0
  %477 = vmatpush1.bf16.msra.mxu0 0
  %478 = vmatprep.subr.bf16.mxu0 0
  %479 = vmatpush1.bf16.msra.mxu0 0
  %480 = vmatprep.subr.bf16.mxu0 0
  %481 = vmatpush1.bf16.msra.mxu0 %v462
  %482 = vmatprep.subr.bf16.mxu0 0
  %483 = vmatpush1.bf16.msra.mxu0 %v461
  %484 = vmatprep.subr.bf16.mxu0 0
  %485 = vmatpush1.bf16.msra.mxu0 %v460
  %486 = vmatprep.subr.bf16.mxu0 0
  %487 = vmatpush1.bf16.msra.mxu0 %v459
  %488 = vmatprep.subr.bf16.mxu0 0
  %489 = vmatpush1.bf16.msra.mxu0 %v458
  %490 = vmatprep.subr.bf16.mxu0 0
  %491 = vmatpush1.bf16.msra.mxu0 %v457
  %492 = vmatprep.subr.bf16.mxu0 0
  %493 = vmatpush2.bf16.msra.mxu0 0
  %494 = vmatprep.subr.bf16.mxu0 0
  %495 = vmatpush2.bf16.msra.mxu0 0
  %496 = vmatprep.subr.bf16.mxu0 0
  %497 = vmatpush2.bf16.msra.mxu0 0
  %498 = vmatprep.subr.bf16.mxu0 0
  %499 = vmatpush2.bf16.msra.mxu0 0
  %500 = vmatprep.subr.bf16.mxu0 0
  %501 = vmatpush2.bf16.msra.mxu0 0
  %502 = vmatprep.subr.bf16.mxu0 0
  %503 = vmatpush2.bf16.msra.mxu0 0
  %504 = vmatprep.subr.bf16.mxu0 0
  %505 = vmatpush2.bf16.msra.mxu0 0
  %506 = vmatprep.subr.bf16.mxu0 0
  %507 = vmatpush2.bf16.msra.mxu0 0
  %508 = vmatprep.mubr.bf16.mxu0 0
  %509 = vmatmul.mubr.bf16.gmra.mxu0 %v471
  %v510 = vpop.f32.mrf.mxu0
  %v511 = vadd.f32 0.0, %v510
  %v512 = vpop.f32.mrf.mxu0
  %v513 = vpop.f32.mrf.mxu0
  %v514 = vadd.f32 0.0, %v513
  %v515 = vpop.f32.mrf.mxu0
  %516 = vmatprep.mubr.bf16.mxu0 0
  %517 = vmatmul.mubr.bf16.gmra.mxu0 %v474
  %v518 = vpop.f32.mrf.mxu0
  %v519 = vadd.f32 0.0, %v518
  %v520 = vpop.f32.mrf.mxu0
  %v521 = vpop.f32.mrf.mxu0
  %v522 = vadd.f32 0.0, %v521
  %v523 = vpop.f32.mrf.mxu0
  %524 = vdwg.mxu0
  %v525 = vld [vmem:[%s5] sm:$0xff]
  %v526 = vld [vmem:[%s5 + $0x8] sm:$0xff]
  %v527 = vld [vmem:[%s5 + $0x10] sm:$0xff]
  %v528 = vld [vmem:[%s5 + $0x18] sm:$0xff]
  %530 = vset.pattern.permute.xlu0 0
  %531 = vperm.xlu0 %530, %v525
  %v532 = vpop.permute.xlu0 %531
  %535 = vset.pattern.permute.xlu0 0
  %536 = vperm.xlu0 %535, %v526
  %v537 = vpop.permute.xlu0 %536
  %540 = vset.pattern.permute.xlu0 0
  %541 = vperm.xlu0 %540, %v527
  %v542 = vpop.permute.xlu0 %541
  %545 = vset.pattern.permute.xlu0 0
  %546 = vperm.xlu0 %545, %v528
  %v547 = vpop.permute.xlu0 %546
  %v549 = vmul.f32 %v532, %v511
  %v550 = vmul.f32 %v537, %v514
  %v551 = vmul.f32 %v542, %v519
  %v552 = vmul.f32 %v547, %v522
  %v553 = vld [vmem:[%s6] sm:$0xff]
  %v554 = vld [vmem:[%s6 + $0x8] sm:$0xff]
  %v555 = vld [vmem:[%s6 + $0x10] sm:$0xff]
  %v556 = vld [vmem:[%s6 + $0x18] sm:$0xff]
  %558 = vset.pattern.permute.xlu0 0
  %559 = vperm.xlu0 %558, %v553
  %v560 = vpop.permute.xlu0 %559
  %563 = vset.pattern.permute.xlu0 0
  %564 = vperm.xlu0 %563, %v554
  %v565 = vpop.permute.xlu0 %564
  %568 = vset.pattern.permute.xlu0 0
  %569 = vperm.xlu0 %568, %v555
  %v570 = vpop.permute.xlu0 %569
  %573 = vset.pattern.permute.xlu0 0
  %574 = vperm.xlu0 %573, %v556
  %v575 = vpop.permute.xlu0 %574
  %v577 = vadd.f32 %v549, %v560
  %v578 = vadd.f32 %v550, %v565
  %v579 = vadd.f32 %v551, %v570
  %v580 = vadd.f32 %v552, %v575
  %v581 = vld [vmem:[%s11] sm:$0xff]
  %v582 = vld [vmem:[%s11 + $0x8] sm:$0xff]
  %v583 = vld [vmem:[%s11 + $0x10] sm:$0xff]
  %v584 = vld [vmem:[%s11 + $0x18] sm:$0xff]
  %v585 = vld [vmem:[%s11 + $0x20] sm:$0xf]
  %vm586 = vcmask 293888
  %v588 = vsel %vm586, %v577, 0
  %v591 = vsel %vm586, %v578, 0
  %v594 = vsel %vm586, %v579, 0
  %v597 = vsel %vm586, %v580, 0
  %v600 = vsel %vm116, %v585, 0
  %602 = vmatprep.subr.mxu0 0.0
  %603 = vmatpush1.msra.mxu0 0.0
  %604 = vmatprep.subr.mxu0 0.0
  %605 = vmatpush1.msra.mxu0 0.0
  %606 = vmatprep.subr.mxu0 0.0
  %607 = vmatpush1.msra.mxu0 0.0
  %608 = vmatprep.subr.mxu0 0.0
  %609 = vmatpush1.msra.mxu0 0.0
  %610 = vmatprep.subr.mxu0 0.0
  %611 = vmatpush1.msra.mxu0 0.0
  %612 = vmatprep.subr.mxu0 0.0
  %613 = vmatpush1.msra.mxu0 0.0
  %614 = vmatprep.subr.mxu0 0.0
  %615 = vmatpush1.msra.mxu0 0.0
  %616 = vmatprep.subr.mxu0 0.0
  %617 = vmatpush1.msra.mxu0 0.0
  %618 = vmatprep.subr.mxu0 0.0
  %619 = vmatpush1.msra.mxu0 0.0
  %620 = vmatprep.subr.mxu0 0.0
  %621 = vmatpush1.msra.mxu0 0.0
  %622 = vmatprep.subr.mxu0 0.0
  %623 = vmatpush1.msra.mxu0 0.0
  %624 = vmatprep.subr.mxu0 0.0
  %625 = vmatpush1.msra.mxu0 %v600
  %626 = vmatprep.subr.mxu0 0.0
  %627 = vmatpush1.msra.mxu0 %v584
  %628 = vmatprep.subr.mxu0 0.0
  %629 = vmatpush1.msra.mxu0 %v583
  %630 = vmatprep.subr.mxu0 0.0
  %631 = vmatpush1.msra.mxu0 %v582
  %632 = vmatprep.subr.mxu0 0.0
  %633 = vmatpush1.msra.mxu0 %v581
  %634 = vmatprep.subr.mxu0 0.0
  %635 = vmatpush2.msra.mxu0 0.0
  %636 = vmatprep.subr.mxu0 0.0
  %637 = vmatpush2.msra.mxu0 0.0
  %638 = vmatprep.subr.mxu0 0.0
  %639 = vmatpush2.msra.mxu0 0.0
  %640 = vmatprep.subr.mxu0 0.0
  %641 = vmatpush2.msra.mxu0 0.0
  %642 = vmatprep.subr.mxu0 0.0
  %643 = vmatpush2.msra.mxu0 0.0
  %644 = vmatprep.subr.mxu0 0.0
  %645 = vmatpush2.msra.mxu0 0.0
  %646 = vmatprep.subr.mxu0 0.0
  %647 = vmatpush2.msra.mxu0 0.0
  %648 = vmatprep.subr.mxu0 0.0
  %649 = vmatpush2.msra.mxu0 0.0
  %650 = vmatprep.subr.mxu0 0.0
  %651 = vmatpush2.msra.mxu0 0.0
  %652 = vmatprep.subr.mxu0 0.0
  %653 = vmatpush2.msra.mxu0 0.0
  %654 = vmatprep.subr.mxu0 0.0
  %655 = vmatpush2.msra.mxu0 0.0
  %656 = vmatprep.subr.mxu0 0.0
  %657 = vmatpush2.msra.mxu0 0.0
  %658 = vmatprep.subr.mxu0 0.0
  %659 = vmatpush2.msra.mxu0 0.0
  %660 = vmatprep.subr.mxu0 0.0
  %661 = vmatpush2.msra.mxu0 0.0
  %662 = vmatprep.subr.mxu0 0.0
  %663 = vmatpush2.msra.mxu0 0.0
  %664 = vmatprep.subr.mxu0 0.0
  %665 = vmatpush2.msra.mxu0 0.0
  %666 = vmatprep.mubr.f32.mxu0 0.0
  %667 = vmatmul.mubr.f32.gmra.mxu0 %v588
  %v668 = vpop.f32.mrf.mxu0
  %v669 = vadd.f32 0.0, %v668
  %v670 = vpop.f32.mrf.mxu0
  %671 = vmatprep.mubr.f32.mxu0 0.0
  %672 = vmatmul.mubr.f32.gmra.mxu0 %v591
  %v673 = vpop.f32.mrf.mxu0
  %v674 = vadd.f32 0.0, %v673
  %v675 = vpop.f32.mrf.mxu0
  %676 = vmatprep.mubr.f32.mxu0 0.0
  %677 = vmatmul.mubr.f32.gmra.mxu0 %v594
  %v678 = vpop.f32.mrf.mxu0
  %v679 = vadd.f32 0.0, %v678
  %v680 = vpop.f32.mrf.mxu0
  %681 = vmatprep.mubr.f32.mxu0 0.0
  %682 = vmatmul.mubr.f32.gmra.mxu0 %v597
  %v683 = vpop.f32.mrf.mxu0
  %v684 = vadd.f32 0.0, %v683
  %v685 = vpop.f32.mrf.mxu0
  %686 = vdwg.mxu0
  %v687 = vld [vmem:[%s7] sm:$0xff]
  %v688 = vld [vmem:[%s8] sm:$0xff]
  %690 = vset.pattern.permute.xlu0 0
  %691 = vperm.xlu0 %690, %v688
  %v692 = vpop.permute.xlu0 %691
  %vm694 = vcmask 261120
  %v696 = vsel %vm694, %v687, 0
  %698 = vmatprep.subr.mxu0 0.0
  %699 = vmatpush1.msra.mxu0 0.0
  %700 = vmatprep.subr.mxu0 0.0
  %701 = vmatpush1.msra.mxu0 0.0
  %702 = vmatprep.subr.mxu0 0.0
  %703 = vmatpush1.msra.mxu0 0.0
  %704 = vmatprep.subr.mxu0 0.0
  %705 = vmatpush1.msra.mxu0 0.0
  %706 = vmatprep.subr.mxu0 0.0
  %707 = vmatpush1.msra.mxu0 0.0
  %708 = vmatprep.subr.mxu0 0.0
  %709 = vmatpush1.msra.mxu0 0.0
  %710 = vmatprep.subr.mxu0 0.0
  %711 = vmatpush1.msra.mxu0 0.0
  %712 = vmatprep.subr.mxu0 0.0
  %713 = vmatpush1.msra.mxu0 0.0
  %714 = vmatprep.subr.mxu0 0.0
  %715 = vmatpush1.msra.mxu0 0.0
  %716 = vmatprep.subr.mxu0 0.0
  %717 = vmatpush1.msra.mxu0 0.0
  %718 = vmatprep.subr.mxu0 0.0
  %719 = vmatpush1.msra.mxu0 0.0
  %720 = vmatprep.subr.mxu0 0.0
  %721 = vmatpush1.msra.mxu0 0.0
  %722 = vmatprep.subr.mxu0 0.0
  %723 = vmatpush1.msra.mxu0 %v684
  %724 = vmatprep.subr.mxu0 0.0
  %725 = vmatpush1.msra.mxu0 %v679
  %726 = vmatprep.subr.mxu0 0.0
  %727 = vmatpush1.msra.mxu0 %v674
  %728 = vmatprep.subr.mxu0 0.0
  %729 = vmatpush1.msra.mxu0 %v669
  %730 = vmatprep.subr.mxu0 0.0
  %731 = vmatpush2.msra.mxu0 0.0
  %732 = vmatprep.subr.mxu0 0.0
  %733 = vmatpush2.msra.mxu0 0.0
  %734 = vmatprep.subr.mxu0 0.0
  %735 = vmatpush2.msra.mxu0 0.0
  %736 = vmatprep.subr.mxu0 0.0
  %737 = vmatpush2.msra.mxu0 0.0
  %738 = vmatprep.subr.mxu0 0.0
  %739 = vmatpush2.msra.mxu0 0.0
  %740 = vmatprep.subr.mxu0 0.0
  %741 = vmatpush2.msra.mxu0 0.0
  %742 = vmatprep.subr.mxu0 0.0
  %743 = vmatpush2.msra.mxu0 0.0
  %744 = vmatprep.subr.mxu0 0.0
  %745 = vmatpush2.msra.mxu0 0.0
  %746 = vmatprep.subr.mxu0 0.0
  %747 = vmatpush2.msra.mxu0 0.0
  %748 = vmatprep.subr.mxu0 0.0
  %749 = vmatpush2.msra.mxu0 0.0
  %750 = vmatprep.subr.mxu0 0.0
  %751 = vmatpush2.msra.mxu0 0.0
  %752 = vmatprep.subr.mxu0 0.0
  %753 = vmatpush2.msra.mxu0 0.0
  %754 = vmatprep.subr.mxu0 0.0
  %755 = vmatpush2.msra.mxu0 0.0
  %756 = vmatprep.subr.mxu0 0.0
  %757 = vmatpush2.msra.mxu0 0.0
  %758 = vmatprep.subr.mxu0 0.0
  %759 = vmatpush2.msra.mxu0 0.0
  %760 = vmatprep.subr.mxu0 0.0
  %761 = vmatpush2.msra.mxu0 0.0
  %762 = vmatprep.mubr.f32.mxu0 0.0
  %763 = vmatmul.mubr.f32.gmra.mxu0 %v696
  %v764 = vpop.f32.mrf.mxu0
  %v765 = vadd.f32 %v692, %v764
  %v766 = vpop.f32.mrf.mxu0
  %767 = vdwg.mxu0
  %v768 = vmax.f32 %v765, 0.0
  %v769 = vld [vmem:[%s9] sm:$0xff]
  %v770 = vld [vmem:[%s9 + $0x8] sm:$0xff]
  %v771 = vld [vmem:[%s9 + $0x10] sm:$0xff]
  %v772 = vld [vmem:[%s9 + $0x18] sm:$0xff]
  %v773 = vld [vmem:[%s10] sm:$0xff]
  %v774 = vld [vmem:[%s10 + $0x8] sm:$0xff]
  %v775 = vld [vmem:[%s10 + $0x10] sm:$0xff]
  %v776 = vld [vmem:[%s10 + $0x18] sm:$0xff]
  %778 = vset.pattern.permute.xlu0 0
  %779 = vperm.xlu0 %778, %v773
  %v780 = vpop.permute.xlu0 %779
  %783 = vset.pattern.permute.xlu0 0
  %784 = vperm.xlu0 %783, %v774
  %v785 = vpop.permute.xlu0 %784
  %788 = vset.pattern.permute.xlu0 0
  %789 = vperm.xlu0 %788, %v775
  %v790 = vpop.permute.xlu0 %789
  %793 = vset.pattern.permute.xlu0 0
  %794 = vperm.xlu0 %793, %v776
  %v795 = vpop.permute.xlu0 %794
  %vm797 = vcmask 64512
  %v799 = vsel %vm797, %v769, 0
  %v802 = vsel %vm797, %v770, 0
  %v805 = vsel %vm797, %v771, 0
  %v808 = vsel %vm797, %v772, 0
  %810 = vmatprep.subr.mxu0 0.0
  %811 = vmatpush1.msra.mxu0 0.0
  %812 = vmatprep.subr.mxu0 0.0
  %813 = vmatpush1.msra.mxu0 0.0
  %814 = vmatprep.subr.mxu0 0.0
  %815 = vmatpush1.msra.mxu0 0.0
  %816 = vmatprep.subr.mxu0 0.0
  %817 = vmatpush1.msra.mxu0 0.0
  %818 = vmatprep.subr.mxu0 0.0
  %819 = vmatpush1.msra.mxu0 0.0
  %820 = vmatprep.subr.mxu0 0.0
  %821 = vmatpush1.msra.mxu0 0.0
  %822 = vmatprep.subr.mxu0 0.0
  %823 = vmatpush1.msra.mxu0 0.0
  %824 = vmatprep.subr.mxu0 0.0
  %825 = vmatpush1.msra.mxu0 0.0
  %826 = vmatprep.subr.mxu0 0.0
  %827 = vmatpush1.msra.mxu0 0.0
  %828 = vmatprep.subr.mxu0 0.0
  %829 = vmatpush1.msra.mxu0 0.0
  %830 = vmatprep.subr.mxu0 0.0
  %831 = vmatpush1.msra.mxu0 0.0
  %832 = vmatprep.subr.mxu0 0.0
  %833 = vmatpush1.msra.mxu0 0.0
  %834 = vmatprep.subr.mxu0 0.0
  %835 = vmatpush1.msra.mxu0 0.0
  %836 = vmatprep.subr.mxu0 0.0
  %837 = vmatpush1.msra.mxu0 0.0
  %838 = vmatprep.subr.mxu0 0.0
  %839 = vmatpush1.msra.mxu0 0.0
  %840 = vmatprep.subr.mxu0 0.0
  %841 = vmatpush1.msra.mxu0 %v768
  %842 = vmatprep.subr.mxu0 0.0
  %843 = vmatpush2.msra.mxu0 0.0
  %844 = vmatprep.subr.mxu0 0.0
  %845 = vmatpush2.msra.mxu0 0.0
  %846 = vmatprep.subr.mxu0 0.0
  %847 = vmatpush2.msra.mxu0 0.0
  %848 = vmatprep.subr.mxu0 0.0
  %849 = vmatpush2.msra.mxu0 0.0
  %850 = vmatprep.subr.mxu0 0.0
  %851 = vmatpush2.msra.mxu0 0.0
  %852 = vmatprep.subr.mxu0 0.0
  %853 = vmatpush2.msra.mxu0 0.0
  %854 = vmatprep.subr.mxu0 0.0
  %855 = vmatpush2.msra.mxu0 0.0
  %856 = vmatprep.subr.mxu0 0.0
  %857 = vmatpush2.msra.mxu0 0.0
  %858 = vmatprep.subr.mxu0 0.0
  %859 = vmatpush2.msra.mxu0 0.0
  %860 = vmatprep.subr.mxu0 0.0
  %861 = vmatpush2.msra.mxu0 0.0
  %862 = vmatprep.subr.mxu0 0.0
  %863 = vmatpush2.msra.mxu0 0.0
  %864 = vmatprep.subr.mxu0 0.0
  %865 = vmatpush2.msra.mxu0 0.0
  %866 = vmatprep.subr.mxu0 0.0
  %867 = vmatpush2.msra.mxu0 0.0
  %868 = vmatprep.subr.mxu0 0.0
  %869 = vmatpush2.msra.mxu0 0.0
  %870 = vmatprep.subr.mxu0 0.0
  %871 = vmatpush2.msra.mxu0 0.0
  %872 = vmatprep.subr.mxu0 0.0
  %873 = vmatpush2.msra.mxu0 0.0
  %874 = vmatprep.mubr.f32.mxu0 0.0
  %875 = vmatmul.mubr.f32.gmra.mxu0 %v799
  %v876 = vpop.f32.mrf.mxu0
  %v877 = vadd.f32 %v780, %v876
  %v878 = vpop.f32.mrf.mxu0
  %879 = vmatprep.mubr.f32.mxu0 0.0
  %880 = vmatmul.mubr.f32.gmra.mxu0 %v802
  %v881 = vpop.f32.mrf.mxu0
  %v882 = vadd.f32 %v785, %v881
  %v883 = vpop.f32.mrf.mxu0
  %884 = vmatprep.mubr.f32.mxu0 0.0
  %885 = vmatmul.mubr.f32.gmra.mxu0 %v805
  %v886 = vpop.f32.mrf.mxu0
  %v887 = vadd.f32 %v790, %v886
  %v888 = vpop.f32.mrf.mxu0
  %889 = vmatprep.mubr.f32.mxu0 0.0
  %890 = vmatmul.mubr.f32.gmra.mxu0 %v808
  %v891 = vpop.f32.mrf.mxu0
  %v892 = vadd.f32 %v795, %v891
  %v893 = vpop.f32.mrf.mxu0
  %894 = vdwg.mxu0
  %v895 = vxor.u32 %v877, 2147483648
  %v896 = vxor.u32 %v882, 2147483648
  %v897 = vxor.u32 %v887, 2147483648
  %v898 = vxor.u32 %v892, 2147483648
  %v899 = vmul.f32 %v895, 1.442695
  %v900 = vpow.pop %v899
  %v901 = vmul.f32 %v896, 1.442695
  %v902 = vpow.pop %v901
  %v903 = vmul.f32 %v897, 1.442695
  %v904 = vpow.pop %v903
  %v905 = vmul.f32 %v898, 1.442695
  %v906 = vpow.pop %v905
  %v907 = vadd.f32 %v900, 1.0
  %v908 = vadd.f32 %v902, 1.0
  %v909 = vadd.f32 %v904, 1.0
  %v910 = vadd.f32 %v906, 1.0
  %v911 = vrcp.pop %v907
  %v912 = vmul.f32 1.0, %v911
  %v913 = vrcp.pop %v908
  %v914 = vmul.f32 1.0, %v913
  %v915 = vrcp.pop %v909
  %v916 = vmul.f32 1.0, %v915
  %v917 = vrcp.pop %v910
  %v918 = vmul.f32 1.0, %v917
  %v919 = vld [vmem:[%s12] sm:$0x3]
  %vm920 = vcmask 15360
  %v922 = vsel %vm920, %v912, 0
  %v925 = vsel %vm920, %v914, 0
  %v928 = vsel %vm920, %v916, 0
  %v931 = vsel %vm920, %v918, 0
  %vm933 = vcmask 1041408
  %v935 = vsel %vm933, %v919, 0
  %937 = vmatprep.subr.mxu0 0.0
  %938 = vmatpush1.msra.mxu0 0.0
  %939 = vmatprep.subr.mxu0 0.0
  %940 = vmatpush1.msra.mxu0 0.0
  %941 = vmatprep.subr.mxu0 0.0
  %942 = vmatpush1.msra.mxu0 0.0
  %943 = vmatprep.subr.mxu0 0.0
  %944 = vmatpush1.msra.mxu0 0.0
  %945 = vmatprep.subr.mxu0 0.0
  %946 = vmatpush1.msra.mxu0 0.0
  %947 = vmatprep.subr.mxu0 0.0
  %948 = vmatpush1.msra.mxu0 0.0
  %949 = vmatprep.subr.mxu0 0.0
  %950 = vmatpush1.msra.mxu0 0.0
  %951 = vmatprep.subr.mxu0 0.0
  %952 = vmatpush1.msra.mxu0 0.0
  %953 = vmatprep.subr.mxu0 0.0
  %954 = vmatpush1.msra.mxu0 0.0
  %955 = vmatprep.subr.mxu0 0.0
  %956 = vmatpush1.msra.mxu0 0.0
  %957 = vmatprep.subr.mxu0 0.0
  %958 = vmatpush1.msra.mxu0 0.0
  %959 = vmatprep.subr.mxu0 0.0
  %960 = vmatpush1.msra.mxu0 0.0
  %961 = vmatprep.subr.mxu0 0.0
  %962 = vmatpush1.msra.mxu0 0.0
  %963 = vmatprep.subr.mxu0 0.0
  %964 = vmatpush1.msra.mxu0 0.0
  %965 = vmatprep.subr.mxu0 0.0
  %966 = vmatpush1.msra.mxu0 0.0
  %967 = vmatprep.subr.mxu0 0.0
  %968 = vmatpush1.msra.mxu0 %v935
  %969 = vmatprep.subr.mxu0 0.0
  %970 = vmatpush2.msra.mxu0 0.0
  %971 = vmatprep.subr.mxu0 0.0
  %972 = vmatpush2.msra.mxu0 0.0
  %973 = vmatprep.subr.mxu0 0.0
  %974 = vmatpush2.msra.mxu0 0.0
  %975 = vmatprep.subr.mxu0 0.0
  %976 = vmatpush2.msra.mxu0 0.0
  %977 = vmatprep.subr.mxu0 0.0
  %978 = vmatpush2.msra.mxu0 0.0
  %979 = vmatprep.subr.mxu0 0.0
  %980 = vmatpush2.msra.mxu0 0.0
  %981 = vmatprep.subr.mxu0 0.0
  %982 = vmatpush2.msra.mxu0 0.0
  %983 = vmatprep.subr.mxu0 0.0
  %984 = vmatpush2.msra.mxu0 0.0
  %985 = vmatprep.subr.mxu0 0.0
  %986 = vmatpush2.msra.mxu0 0.0
  %987 = vmatprep.subr.mxu0 0.0
  %988 = vmatpush2.msra.mxu0 0.0
  %989 = vmatprep.subr.mxu0 0.0
  %990 = vmatpush2.msra.mxu0 0.0
  %991 = vmatprep.subr.mxu0 0.0
  %992 = vmatpush2.msra.mxu0 0.0
  %993 = vmatprep.subr.mxu0 0.0
  %994 = vmatpush2.msra.mxu0 0.0
  %995 = vmatprep.subr.mxu0 0.0
  %996 = vmatpush2.msra.mxu0 0.0
  %997 = vmatprep.subr.mxu0 0.0
  %998 = vmatpush2.msra.mxu0 0.0
  %999 = vmatprep.subr.mxu0 0.0
  %1000 = vmatpush2.msra.mxu0 0.0
  %1001 = vmatprep.mubr.f32.mxu0 0.0
  %1002 = vmatmul.mubr.f32.gmra.mxu0 %v922
  %v1003 = vpop.f32.mrf.mxu0
  %v1004 = vadd.f32 0.0, %v1003
  %v1005 = vpop.f32.mrf.mxu0
  %1006 = vmatprep.mubr.f32.mxu0 0.0
  %1007 = vmatmul.mubr.f32.gmra.mxu0 %v925
  %v1008 = vpop.f32.mrf.mxu0
  %v1009 = vadd.f32 0.0, %v1008
  %v1010 = vpop.f32.mrf.mxu0
  %1011 = vmatprep.mubr.f32.mxu0 0.0
  %1012 = vmatmul.mubr.f32.gmra.mxu0 %v928
  %v1013 = vpop.f32.mrf.mxu0
  %v1014 = vadd.f32 0.0, %v1013
  %v1015 = vpop.f32.mrf.mxu0
  %1016 = vmatprep.mubr.f32.mxu0 0.0
  %1017 = vmatmul.mubr.f32.gmra.mxu0 %v931
  %v1018 = vpop.f32.mrf.mxu0
  %v1019 = vadd.f32 0.0, %v1018
  %v1020 = vpop.f32.mrf.mxu0
  %1021 = vdwg.mxu0
  %v1022 = vmul.f32 %v577, %v1004
  %v1023 = vmul.f32 %v578, %v1009
  %v1024 = vmul.f32 %v579, %v1014
  %v1025 = vmul.f32 %v580, %v1019
  %v1026 = vadd.f32 %v1022, %v293
  %v1027 = vadd.f32 %v1023, %v294
  %v1028 = vadd.f32 %v1024, %v295
  %v1029 = vadd.f32 %v1025, %v296
  %v1030 = vmax.f32 %v1026, 0.0
  %v1031 = vmax.f32 %v1027, 0.0
  %v1032 = vmax.f32 %v1028, 0.0
  %v1033 = vmax.f32 %v1029, 0.0
  %1034 = vst.msk [vmem:[%s14] sm:$0xff] %vm586, %v1030
  %1035 = vst.msk [vmem:[%s14 + $0x8] sm:$0xff] %vm586, %v1031
  %1036 = vst.msk [vmem:[%s14 + $0x10] sm:$0xff] %vm586, %v1032
  %1037 = vst.msk [vmem:[%s14 + $0x18] sm:$0xff] %vm586, %v1033
  // Predicated region
  $region58: #{basic_block_1d.1} parent=0 // pred_check
    _
  $region59: #{basic_block_1d.1} parent=0 // pred_check_branch
    %1039 = sbr.rel (0) target = $region61
  $region60: #{basic_block_1d.1} parent=0 // pred_region
    _
  $region61: #{basic_block_1d.1} parent=0 // pred_fallthru
    _
  // Predicated region
  $region62: #{basic_block_1d.1} parent=0 // pred_check
    _
  $region63: #{basic_block_1d.1} parent=0 // pred_check_branch
    %1041 = sbr.rel (0) target = $region65
  $region64: #{basic_block_1d.1} parent=0 // pred_region
    _
  $region65: #{basic_block_1d.1} parent=0 // pred_fallthru
    _

</llo_original>
